<compile_context>
chip_gen: v5e
topology: v5e:2x2
jax: 0.10.0
libtpu: 0.0.40
codegen_flags: <defaults>
</compile_context>

<pallas_src>
import functools
import math

import jax
import jax.numpy as jnp
from jax import lax
from jax.experimental import pallas as pl
from jax.experimental.pallas import tpu as pltpu

_LANE = 128
_SUB = 8
_CHUNK_ROWS = 512          # in-kernel strip: 512x128 f32 = 256 KiB per input
_MAX_BLOCK_ROWS = 8192     # 8192x128 f32 = 4 MiB per input per grid step


def _round_up(x, m):
    return ((x + m - 1) // m) * m


def _sublane_multiple(*dtypes):
    """Minimum sublane multiple that is packing-safe for all given dtypes."""
    m = 8
    for dt in dtypes:
        bits = jnp.dtype(dt).itemsize * 8
        if bits <= 8:
            m = max(m, 32)
        elif bits <= 16:
            m = max(m, 16)
    return m


def _fscore_kernel(pr_ref, gt_ref, tp_out, den_out, *, threshold, beta2, rows,
                   block_rows, blocks_per_split, need_mask, activation):
    s = pl.program_id(0)                 # megacore-parallel split
    b = pl.program_id(1)                 # sequential reduction axis
    i = s * blocks_per_split + b         # logical global row-block index
    base_row = i * block_rows            # row index fits int32 for any int32-sized array

    @pl.when(b == 0)
    def _():
        tp_out[...] = jnp.zeros_like(tp_out)
        den_out[...] = jnp.zeros_like(den_out)

    chunk = block_rows if block_rows <= _CHUNK_ROWS else _CHUNK_ROWS
    n_chunks = block_rows // chunk       # exact by construction in the wrapper

    def strip_sums(row0, masked):
        """(8,128) partial sums of one (chunk,128) strip starting at block-row `row0`."""
        pr = pr_ref[pl.ds(row0, chunk), :].astype(jnp.float32)
        gt = gt_ref[pl.ds(row0, chunk), :].astype(jnp.float32)
        # Only reached when the threshold could not be folded in the wrapper.
        if activation == "sigmoid":
            pr = jax.nn.sigmoid(pr)
        elif activation == "tanh":
            pr = jnp.tanh(pr)
        pr_bin = (pr > threshold).astype(jnp.float32)
        tp = gt * pr_bin                  # -> sum(gt * pr)
        den = beta2 * gt + pr_bin         # -> beta^2*sum(gt) + sum(pr)
        if masked:
            r = lax.broadcasted_iota(jnp.int32, (chunk, _LANE), 0)
            valid = (base_row + row0 + r) < rows
            tp = jnp.where(valid, tp, 0.0)
            den = jnp.where(valid, den, 0.0)
        # (chunk,128) -> (8,128): exact sublane-tile fold, pure VPU vreg adds (no XLU).
        tp8 = jnp.sum(tp.reshape(-1, _SUB, _LANE), axis=0)
        den8 = jnp.sum(den.reshape(-1, _SUB, _LANE), axis=0)
        return tp8, den8

    def accumulate(masked):
        if n_chunks == 1:
            tp8, den8 = strip_sums(0, masked)
        else:
            def body(q, carry):
                t8, d8 = strip_sums(pl.multiple_of(q * chunk, chunk), masked)
                return carry[0] + t8, carry[1] + d8
            zero = jnp.zeros((_SUB, _LANE), jnp.float32)
            tp8, den8 = lax.fori_loop(0, n_chunks, body, (zero, zero))
        # Output blocks are revisited across the b axis -> act as resident accumulators.
        tp_out[...] += tp8
        den_out[...] += den8

    if need_mask:
        # Only the ragged/phantom tail blocks pay the masking VALU cost.
        is_tail = (i + 1) * block_rows > rows

        @pl.when(is_tail)
        def _():
            accumulate(True)

        @pl.when(jnp.logical_not(is_tail))
        def _():
            accumulate(False)
    else:
        accumulate(False)


def fscore(y_pr, y_gt, beta=1.0, eps=1e-7, threshold=0.5, activation=None,
           max_block_rows=_MAX_BLOCK_ROWS):
    """Pallas F-score metric. Accepts any-shape pred/target, returns scalar f32."""
    assert y_pr.shape == y_gt.shape
    total = int(y_pr.size)
    eps = float(eps)
    beta2 = float(beta) ** 2

    # Monotonic activations are folded into the threshold (exact; removes all EUP work).
    thr = float(threshold)
    act_in_kernel = None
    if activation in (None, "identity"):
        pass
    elif activation == "sigmoid":
        if 0.0 < thr < 1.0:
            thr = math.log(thr / (1.0 - thr))
        else:
            act_in_kernel = "sigmoid"
    elif activation == "tanh":
        if -1.0 < thr < 1.0:
            thr = math.atanh(thr)
        else:
            act_in_kernel = "tanh"
    else:
        # TODO(synk): softmax2d/softmax/logsoftmax/argmax/clamp/callable activations and
        # ignore_channels selection are not implemented in-kernel.
        raise NotImplementedError(f"activation={activation!r} not supported")

    if total == 0:  # degenerate empty input: (0+eps)/(0+eps)
        return jnp.asarray(1.0, dtype=jnp.float32)

    pr_flat = jnp.reshape(y_pr, (-1,))
    gt_flat = jnp.reshape(y_gt, (-1,))

    main = (total // _LANE) * _LANE      # lane-aligned prefix handled by the kernel
    rem = total - main

    def _prep(x):
        x = x.astype(jnp.float32)
        if act_in_kernel == "sigmoid":
            x = jax.nn.sigmoid(x)
        elif act_in_kernel == "tanh":
            x = jnp.tanh(x)
        return x

    tp_tail = 0.0
    den_tail = 0.0
    if rem:
        # <=127-element tail in plain JAX -> no whole-array pad/copy just for raggedness.
        pr_t = _prep(pr_flat[main:])
        gt_t = gt_flat[main:].astype(jnp.float32)
        pr_b = (pr_t > thr).astype(jnp.float32)
        tp_tail = jnp.sum(gt_t * pr_b)
        den_tail = jnp.sum(beta2 * gt_t + pr_b)

    if main == 0:
        tp_s, den_s = tp_tail, den_tail
    else:
        rows = main // _LANE
        pr2 = (pr_flat[:main] if rem else pr_flat).reshape(rows, _LANE)
        gt2 = (gt_flat[:main] if rem else gt_flat).reshape(rows, _LANE)

        # Block sizing: dtype-aware sublane multiple (f32:8 / bf16:16 / int8,bool:32),
        # and a multiple of the in-kernel strip when larger than one strip.
        sub = _sublane_multiple(y_pr.dtype, y_gt.dtype)
        max_block_rows = max(sub, int(max_block_rows))
        if max_block_rows > _CHUNK_ROWS:
            max_block_rows -= max_block_rows % _CHUNK_ROWS
        else:
            max_block_rows = _round_up(max_block_rows, sub)
        block_rows = min(max_block_rows, _round_up(rows, sub))
        if block_rows > _CHUNK_ROWS:
            block_rows = min(_round_up(block_rows, _CHUNK_ROWS), max_block_rows)

        n_blocks = -(-rows // block_rows)
        num_splits = 2 if n_blocks >= 2 else 1   # feed both TCs on dual-core (v7x) chips
        blocks_per_split = -(-n_blocks // num_splits)
        n_padded = num_splits * blocks_per_split
        need_mask = (rows % block_rows != 0) or (n_padded != n_blocks)

        def in_map(s, b):
            # Clamp phantom trailing blocks to a valid window; kernel masks them to zero.
            return (jnp.minimum(s * blocks_per_split + b, n_blocks - 1), 0)

        kernel = functools.partial(
            _fscore_kernel, threshold=thr, beta2=beta2, rows=rows,
            block_rows=block_rows, blocks_per_split=blocks_per_split,
            need_mask=need_mask, activation=act_in_kernel)

        tp_parts, den_parts = pl.pallas_call(
            kernel,
            out_shape=(jax.ShapeDtypeStruct((num_splits * _SUB, _LANE), jnp.float32),
                       jax.ShapeDtypeStruct((num_splits * _SUB, _LANE), jnp.float32)),
            grid_spec=pltpu.PrefetchScalarGridSpec(
                num_scalar_prefetch=0,
                grid=(num_splits, blocks_per_split),
                in_specs=[pl.BlockSpec((block_rows, _LANE), in_map),
                          pl.BlockSpec((block_rows, _LANE), in_map)],
                out_specs=(pl.BlockSpec((_SUB, _LANE), lambda s, b: (s, 0)),
                           pl.BlockSpec((_SUB, _LANE), lambda s, b: (s, 0))),
            ),
            compiler_params=pltpu.CompilerParams(
                dimension_semantics=("parallel", "arbitrary"),
                vmem_limit_bytes=40 * 1024 * 1024),
        )(pr2, gt2)

        tp_s = jnp.sum(tp_parts) + tp_tail
        den_s = jnp.sum(den_parts) + den_tail

    return ((1.0 + beta2) * tp_s + eps) / (den_s + eps)


def fscore_reference(y_pr, y_gt, beta=1.0, eps=1e-7, threshold=0.5, activation=None):
    pr = y_pr.astype(jnp.float32)
    if activation == "sigmoid":
        pr = jax.nn.sigmoid(pr)
    elif activation == "tanh":
        pr = jnp.tanh(pr)
    pr = (pr > threshold).astype(jnp.float32)
    gt = y_gt.astype(jnp.float32)
    tp = jnp.sum(gt * pr)
    fp = jnp.sum(pr) - tp
    fn = jnp.sum(gt) - tp
    b2 = float(beta) ** 2
    return ((1 + b2) * tp + eps) / ((1 + b2) * tp + b2 * fn + fp + eps)


if __name__ == "__main__":
    key = jax.random.PRNGKey(0)
    ks = jax.random.split(key, 10)

    def check(pr, gt, **kw):
        ref_kw = {k: v for k, v in kw.items() if k != "max_block_rows"}
        got = fscore(pr, gt, **kw)
        jax.block_until_ready(got)
        ref = fscore_reference(pr, gt, **ref_kw)
        assert jnp.allclose(got, ref, atol=1e-6, rtol=1e-5), (got, ref, kw)

    # 1) Typical NCHW segmentation-metric input (batch=2, channels=4, spatial=16).
    pr1 = jax.random.uniform(ks[0], (2, 4, 16, 16), dtype=jnp.float32)
    gt1 = (jax.random.uniform(ks[1], (2, 4, 16, 16)) > 0.5).astype(jnp.float32)
    check(pr1, gt1)

    # 2) Ragged size (600 elems): lane-aligned prefix in-kernel + tiny plain-JAX tail.
    pr2 = jax.random.uniform(ks[2], (2, 3, 10, 10), dtype=jnp.float32)
    gt2 = (jax.random.uniform(ks[3], (2, 3, 10, 10)) > 0.5).astype(jnp.float32)
    check(pr2, gt2)

    # 3) Multi-block + 2-way core split + phantom/ragged tail blocks (small max block
    #    size forces the multi-block path at a small shape), beta=2.
    pr3 = jax.random.uniform(ks[4], (2, 4, 40, 32), dtype=jnp.float32)
    gt3 = (jax.random.uniform(ks[5], (2, 4, 40, 32)) > 0.5).astype(jnp.float32)
    check(pr3, gt3, beta=2.0, max_block_rows=32)

    # 4) Sigmoid activation on logits: folded into the threshold in the wrapper.
    pr4 = 2.0 * jax.random.normal(ks[6], (2, 4, 16, 16), dtype=jnp.float32)
    gt4 = (jax.random.uniform(ks[7], (2, 4, 16, 16)) > 0.5).astype(jnp.float32)
    check(pr4, gt4, activation="sigmoid", threshold=0.6)

    # 5) Larger block exercising the in-kernel strip loop (n_chunks > 1) + tail mask.
    pr5 = jax.random.uniform(ks[8], (2, 4, 96, 128), dtype=jnp.float32)
    gt5 = (jax.random.uniform(ks[9], (2, 4, 96, 128)) > 0.5).astype(jnp.float32)
    check(pr5, gt5)

    print("KERNEL_OK")
</pallas_src>

<mosaic_0001>
module attributes {stable_mosaic.version = 11 : i64} {
  func.func @_fscore_kernel(%arg0: i32, %arg1: i32, %arg2: memref<16x128xf32, #tpu.memory_space<vmem>>, %arg3: memref<16x128xf32, #tpu.memory_space<vmem>>, %arg4: memref<8x128xf32, #tpu.memory_space<vmem>>, %arg5: memref<8x128xf32, #tpu.memory_space<vmem>>) attributes {dimension_semantics = [#tpu.dimension_semantics<parallel>, #tpu.dimension_semantics<arbitrary>], iteration_bounds = array<i64: 1, 1>, scalar_prefetch = 0 : i64, scratch_operands = 0 : i64, tpu.core_type = #tpu.core_type<tc>, window_params = [{transform_indices = @transform_0, window_bounds = array<i64: 16, 128>}, {transform_indices = @transform_1, window_bounds = array<i64: 16, 128>}, {transform_indices = @transform_2, window_bounds = array<i64: 8, 128>}, {transform_indices = @transform_3, window_bounds = array<i64: 8, 128>}]} {
    %c0_i32 = arith.constant 0 : i32
    %0 = arith.cmpi eq, %arg1, %c0_i32 : i32
    %1 = arith.extui %0 : i1 to i32
    %c0_i32_0 = arith.constant 0 : i32
    %2 = arith.cmpi ne, %1, %c0_i32_0 : i32
    scf.if %2 {
      %cst_15 = arith.constant 0.000000e+00 : f32
      %23 = vector.broadcast %cst_15 : f32 to vector<8x128xf32>
      %c0_16 = arith.constant 0 : index
      %c0_17 = arith.constant 0 : index
      %24 = vector.load %arg4[%c0_16, %c0_17] : memref<8x128xf32, #tpu.memory_space<vmem>>, vector<8x128xf32>
      tpu.vector_store %arg4[%c0_16, %c0_17], %23 {strides = array<i32>} : memref<8x128xf32, #tpu.memory_space<vmem>>, vector<8x128xf32>,
      %cst_18 = arith.constant 0.000000e+00 : f32
      %25 = vector.broadcast %cst_18 : f32 to vector<8x128xf32>
      %c0_19 = arith.constant 0 : index
      %c0_20 = arith.constant 0 : index
      %26 = vector.load %arg5[%c0_19, %c0_20] : memref<8x128xf32, #tpu.memory_space<vmem>>, vector<8x128xf32>
      tpu.vector_store %arg5[%c0_19, %c0_20], %25 {strides = array<i32>} : memref<8x128xf32, #tpu.memory_space<vmem>>, vector<8x128xf32>,
    } else {
    }
    %c0 = arith.constant 0 : index
    %c0_1 = arith.constant 0 : index
    %3 = vector.load %arg2[%c0, %c0_1] : memref<16x128xf32, #tpu.memory_space<vmem>>, vector<16x128xf32>
    %c0_2 = arith.constant 0 : index
    %c0_3 = arith.constant 0 : index
    %4 = vector.load %arg3[%c0_2, %c0_3] : memref<16x128xf32, #tpu.memory_space<vmem>>, vector<16x128xf32>
    %cst = arith.constant 5.000000e-01 : f32
    %5 = vector.broadcast %cst : f32 to vector<16x128xf32>
    %6 = arith.cmpf ogt, %3, %5 : vector<16x128xf32>
    %7 = arith.extui %6 : vector<16x128xi1> to vector<16x128xi32>
    %8 = arith.sitofp %7 : vector<16x128xi32> to vector<16x128xf32>
    %9 = arith.mulf %4, %8 : vector<16x128xf32>
    %cst_4 = arith.constant 1.000000e+00 : f32
    %10 = vector.broadcast %cst_4 : f32 to vector<16x128xf32>
    %11 = arith.mulf %10, %4 : vector<16x128xf32>
    %12 = arith.addf %11, %8 : vector<16x128xf32>
    %13 = vector.shape_cast %9 : vector<16x128xf32> to vector<2x8x128xf32>
    %cst_5 = arith.constant dense<0.000000e+00> : vector<8x128xf32>
    %14 = vector.multi_reduction <add>, %13, %cst_5 [0] : vector<2x8x128xf32> to vector<8x128xf32>
    %15 = vector.shape_cast %12 : vector<16x128xf32> to vector<2x8x128xf32>
    %cst_6 = arith.constant dense<0.000000e+00> : vector<8x128xf32>
    %16 = vector.multi_reduction <add>, %15, %cst_6 [0] : vector<2x8x128xf32> to vector<8x128xf32>
    %c0_7 = arith.constant 0 : index
    %c0_8 = arith.constant 0 : index
    %17 = vector.load %arg4[%c0_7, %c0_8] : memref<8x128xf32, #tpu.memory_space<vmem>>, vector<8x128xf32>
    %18 = arith.addf %17, %14 : vector<8x128xf32>
    %c0_9 = arith.constant 0 : index
    %c0_10 = arith.constant 0 : index
    %19 = vector.load %arg4[%c0_9, %c0_10] : memref<8x128xf32, #tpu.memory_space<vmem>>, vector<8x128xf32>
    tpu.vector_store %arg4[%c0_9, %c0_10], %18 {strides = array<i32>} : memref<8x128xf32, #tpu.memory_space<vmem>>, vector<8x128xf32>,
    %c0_11 = arith.constant 0 : index
    %c0_12 = arith.constant 0 : index
    %20 = vector.load %arg5[%c0_11, %c0_12] : memref<8x128xf32, #tpu.memory_space<vmem>>, vector<8x128xf32>
    %21 = arith.addf %20, %16 : vector<8x128xf32>
    %c0_13 = arith.constant 0 : index
    %c0_14 = arith.constant 0 : index
    %22 = vector.load %arg5[%c0_13, %c0_14] : memref<8x128xf32, #tpu.memory_space<vmem>>, vector<8x128xf32>
    tpu.vector_store %arg5[%c0_13, %c0_14], %21 {strides = array<i32>} : memref<8x128xf32, #tpu.memory_space<vmem>>, vector<8x128xf32>,
    return
  }
  func.func @transform_0(%arg0: i32, %arg1: i32) -> (i32, i32) {
    %c1_i32 = arith.constant 1 : i32
    %0 = arith.muli %arg0, %c1_i32 : i32
    %1 = arith.addi %0, %arg1 : i32
    %c0_i32 = arith.constant 0 : i32
    %2 = arith.minsi %1, %c0_i32 : i32
    %c0_i32_0 = arith.constant 0 : i32
    %c0_i32_1 = arith.constant 0 : i32
    return %2, %c0_i32_0 : i32, i32
  }
  func.func @transform_1(%arg0: i32, %arg1: i32) -> (i32, i32) {
    %c1_i32 = arith.constant 1 : i32
    %0 = arith.muli %arg0, %c1_i32 : i32
    %1 = arith.addi %0, %arg1 : i32
    %c0_i32 = arith.constant 0 : i32
    %2 = arith.minsi %1, %c0_i32 : i32
    %c0_i32_0 = arith.constant 0 : i32
    %c0_i32_1 = arith.constant 0 : i32
    return %2, %c0_i32_0 : i32, i32
  }
  func.func @transform_2(%arg0: i32, %arg1: i32) -> (i32, i32) {
    %c0_i32 = arith.constant 0 : i32
    %c0_i32_0 = arith.constant 0 : i32
    return %arg0, %c0_i32 : i32, i32
  }
  func.func @transform_3(%arg0: i32, %arg1: i32) -> (i32, i32) {
    %c0_i32 = arith.constant 0 : i32
    %c0_i32_0 = arith.constant 0 : i32
    return %arg0, %c0_i32 : i32, i32
  }
}

</mosaic_0001>

<llo_original>
// kernel: tpu_custom_call.1
$region0: #{tpu_custom_call.1}
  #allocation0 [shape = 'u32[]', space=smem, size = 0x4, offset = 0x4, fixed_abs, tag = 'smem constant byte address 0x4 - core index']
  #allocation1 [shape = 'u32[72,128]{1,0:T(1,128)}', space=vmem, size = 0x9000, scoped, tag = 'internal scratch']
  %s0 = inlined_call_operand.hbm [shape: f32[16,128], index: 0, kind: input, shape index: {}]
  %s1 = inlined_call_operand.hbm [shape: f32[16,128], index: 1, kind: input, shape index: {}]
  %s2 = inlined_call_operand.hbm [shape: f32[8,128], index: 2, kind: output, shape index: {0}]
  %s3 = inlined_call_operand.hbm [shape: f32[8,128], index: 3, kind: output, shape index: {1}]
  %4 = xla_tuple %s2, %s3
  %s5 = sld [smem:[#allocation0]]
  $region38: #{tpu_custom_call.1} parent=0
    _
  %s7 = ssub.s32 1, %s5
  %s8 = scalar_select 0, %s7, %s5
  $region1: #{tpu_custom_call.1} parent=0
    #allocation2 [shape = 'u8[8192]{0}', space=vmem, size = 0x2000, scoped, tag = 'input window, operand 0, single buffered']
    #allocation3 [shape = 's32[1]{0}', space=sflag, size = 0x4, scoped, tag = 'scoped memory for tpu_custom_call.1']
    #allocation4 [shape = 's32[1]{0}', space=sflag, size = 0x4, scoped, tag = 'scoped memory for tpu_custom_call.1']
    #allocation5 [shape = 'u8[8192]{0}', space=vmem, size = 0x2000, scoped, tag = 'input window, operand 1, single buffered']
    #allocation6 [shape = 's32[1]{0}', space=sflag, size = 0x4, scoped, tag = 'scoped memory for tpu_custom_call.1']
    #allocation7 [shape = 'u8[4096]{0}', space=vmem, size = 0x1000, scoped, tag = 'output window, operand 0, single buffered']
    #allocation8 [shape = 'u8[4096]{0}', space=vmem, size = 0x1000, scoped, tag = 'output window, operand 1, single buffered']
    #allocation9 [shape = 's32[1]{0}', space=sflag, size = 0x4, scoped, tag = 'scoped memory for tpu_custom_call.1']
    %9 = vsyncpa [#allocation3], 0
    %10 = vsyncpa [#allocation6], 0
    %11 = vsyncpa [#allocation4], 0
    %12 = vsyncpa [#allocation9], 0
    // Predicated region
    $region2: #{tpu_custom_call.1} parent=1 // pred_check
      _
    $region3: #{tpu_custom_call.1} parent=1 // pred_check_branch
      %14 = sbr.rel (0) target = $region5
    $region4: #{tpu_custom_call.1} parent=1 // pred_region
      %s15 = sadd.s32 0, 0
      %p16 = scmp.lt.s32.totalorder %s15, 0
      %s17 = scalar_select %p16, %s15, 0
      %s18 = smul.u32 2, %s17
      %20 = vsyncadd [#allocation3], 0
      %s21 = smul.addr %s18, 8
      %s22 = scalar_lea.hbm %s0, %s21
      %s23 = sshll.u32 %s22, 4
      %s24 = int_to_ptr.hbm [resolvable:$true] %s23
      %s25 = sshll.u32 [#allocation2], 4
      %s26 = int_to_ptr.vmem [resolvable:$true] %s25
      %31 = dma.hbm_to_vmem [thread:$0]  %s24, 256, %s26, [#allocation3], 128, 128, 8
    $region5: #{tpu_custom_call.1} parent=1 // pred_fallthru
      _
    // Predicated region
    $region6: #{tpu_custom_call.1} parent=1 // pred_check
      _
    $region7: #{tpu_custom_call.1} parent=1 // pred_check_branch
      %33 = sbr.rel (0) target = $region9
    $region8: #{tpu_custom_call.1} parent=1 // pred_region
      %s34 = sadd.s32 0, 0
      %p35 = scmp.lt.s32.totalorder %s34, 0
      %s36 = scalar_select %p35, %s34, 0
      %s37 = smul.u32 2, %s36
      %39 = vsyncadd [#allocation6], 0
      %s40 = smul.addr %s37, 8
      %s41 = scalar_lea.hbm %s1, %s40
      %s42 = sshll.u32 %s41, 4
      %s43 = int_to_ptr.hbm [resolvable:$true] %s42
      %s44 = sshll.u32 [#allocation5], 4
      %s45 = int_to_ptr.vmem [resolvable:$true] %s44
      %50 = dma.hbm_to_vmem [thread:$0]  %s43, 256, %s45, [#allocation6], 128, 128, 8
    $region9: #{tpu_custom_call.1} parent=1 // pred_fallthru
      _
    // Predicated region
    $region10: #{tpu_custom_call.1} parent=1 // pred_check
      _
    $region11: #{tpu_custom_call.1} parent=1 // pred_check_branch
      %52 = sbr.rel (0) target = $region13
    $region12: #{tpu_custom_call.1} parent=1 // pred_region
      %54 = dma.done [#allocation3], 256
    $region13: #{tpu_custom_call.1} parent=1 // pred_fallthru
      _
    // Predicated region
    $region14: #{tpu_custom_call.1} parent=1 // pred_check
      _
    $region15: #{tpu_custom_call.1} parent=1 // pred_check_branch
      %56 = sbr.rel (0) target = $region17
    $region16: #{tpu_custom_call.1} parent=1 // pred_region
      %58 = dma.done [#allocation6], 256
    $region17: #{tpu_custom_call.1} parent=1 // pred_fallthru
      _
    %s59 = sadd.s32 0, 0
    %p60 = scmp.lt.s32.totalorder %s59, 0
    %s61 = scalar_select %p60, %s59, 0
    %s62 = smul.u32 2, %s61
    %s63 = sadd.s32 0, 0
    %p64 = scmp.lt.s32.totalorder %s63, 0
    %s65 = scalar_select %p64, %s63, 0
    %s66 = smul.u32 2, %s65
    %p67 = scmp.eq.s32.totalorder 0, 0
    // Predicated region
    $region18: #{tpu_custom_call.1} parent=1 // pred_check
      %p68 = pneg %p67
    $region19: #{tpu_custom_call.1} parent=1 // pred_check_branch
      %70 = sbr.rel (%p68) target = $region21
    $region20: #{tpu_custom_call.1} parent=1 // pred_region
      %71 = vst [vmem:[#allocation7] sm:$0xff] 0.0
      %72 = vst [vmem:[#allocation8] sm:$0xff] 0.0
    $region21: #{tpu_custom_call.1} parent=1 // pred_fallthru
      _
    %v73 = vld [vmem:[#allocation2] sm:$0xff]
    %v74 = vld [vmem:[#allocation2 + $0x8] sm:$0xff]
    %v75 = vld [vmem:[#allocation5] sm:$0xff]
    %v76 = vld [vmem:[#allocation5 + $0x8] sm:$0xff]
    %vm77 = vcmp.gt.f32.partialorder %v73, 0.5
    %vm78 = vcmp.gt.f32.partialorder %v74, 0.5
    %v79 = vsel %vm77, 1, 0
    %v80 = vsel %vm78, 1, 0
    %v81 = vcvt.s32.f32 %v79
    %v82 = vcvt.s32.f32 %v80
    %v83 = vmul.f32 %v75, %v81
    %v84 = vmul.f32 %v76, %v82
    %v85 = vadd.f32 %v75, %v81
    %v86 = vadd.f32 %v76, %v82
    %v87 = vadd.f32 %v83, %v84
    %v88 = vadd.f32 %v85, %v86
    %v89 = vld [vmem:[#allocation7] sm:$0xff]
    %v90 = vadd.f32 %v89, %v87
    %91 = vst [vmem:[#allocation7] sm:$0xff] %v90
    %v92 = vld [vmem:[#allocation8] sm:$0xff]
    %v93 = vadd.f32 %v92, %v88
    %94 = vst [vmem:[#allocation8] sm:$0xff] %v93
    // Predicated region
    $region22: #{tpu_custom_call.1} parent=1 // pred_check
      _
    $region23: #{tpu_custom_call.1} parent=1 // pred_check_branch
      %96 = sbr.rel (0) target = $region25
    $region24: #{tpu_custom_call.1} parent=1 // pred_region
      %98 = vsyncadd [#allocation4], 0
      %s100 = sshll.u32 [#allocation7], 4
      %s101 = int_to_ptr.vmem [resolvable:$true] %s100
      %s102 = sshll.u32 %s2, 4
      %s103 = int_to_ptr.hbm [resolvable:$true] %s102
      %105 = dma.vmem_to_hbm [thread:$0]  %s101, 128, %s103, [#allocation4]
    $region25: #{tpu_custom_call.1} parent=1 // pred_fallthru
      _
    // Predicated region
    $region26: #{tpu_custom_call.1} parent=1 // pred_check
      _
    $region27: #{tpu_custom_call.1} parent=1 // pred_check_branch
      %107 = sbr.rel (0) target = $region29
    $region28: #{tpu_custom_call.1} parent=1 // pred_region
      %109 = vsyncadd [#allocation9], 0
      %s111 = sshll.u32 [#allocation8], 4
      %s112 = int_to_ptr.vmem [resolvable:$true] %s111
      %s113 = sshll.u32 %s3, 4
      %s114 = int_to_ptr.hbm [resolvable:$true] %s113
      %116 = dma.vmem_to_hbm [thread:$0]  %s112, 128, %s114, [#allocation9]
    $region29: #{tpu_custom_call.1} parent=1 // pred_fallthru
      _
    // Predicated region
    $region30: #{tpu_custom_call.1} parent=1 // pred_check
      _
    $region31: #{tpu_custom_call.1} parent=1 // pred_check_branch
      %118 = sbr.rel (0) target = $region33
    $region32: #{tpu_custom_call.1} parent=1 // pred_region
      %120 = dma.done [#allocation4], 128
    $region33: #{tpu_custom_call.1} parent=1 // pred_fallthru
      _
    // Predicated region
    $region34: #{tpu_custom_call.1} parent=1 // pred_check
      _
    $region35: #{tpu_custom_call.1} parent=1 // pred_check_branch
      %122 = sbr.rel (0) target = $region37
    $region36: #{tpu_custom_call.1} parent=1 // pred_region
      %124 = dma.done [#allocation9], 128
    $region37: #{tpu_custom_call.1} parent=1 // pred_fallthru
      _
    %125 = vsyncpa [#allocation3], 1
    %126 = vsyncpa [#allocation6], 1
    %127 = vsyncpa [#allocation4], 1
    %128 = vsyncpa [#allocation9], 1

</llo_original>
